<compile_context>
chip_gen: v7x
topology: tpu7x:2x2x1
jax: 0.10.0
libtpu: 0.0.40
codegen_flags: <defaults>
</compile_context>

<pallas_src>
import numpy as np
import jax
import jax.numpy as jnp
from jax import lax
from jax.experimental import pallas as pl
from jax.experimental.pallas import tpu as pltpu

# ----------------------------- problem sizes --------------------------------
B = 2                    # dims[0]
N = 8                    # dims[1] == dims[2]
RC_R, RC_C = 8, 8        # cost_ij shape
RC = RC_R * RC_C         # flattened cost parameter length
LEN_R = N                # len(row_ind)  (== dims[1] -> whole chart initialised)
LEN_C = N                # len(col_ind)
BNN = B * N * N          # flat chart size (== torch.flatten(mat).numel())
L = ((BNN + 127) // 128) * 128       # lane-padded flat chart length
CAND = 4                 # candidates/row (t: 4 srcs; i: 2 pair-sums + 2 singles)


# ------------------------------- kernel --------------------------------------
def _tclt_kernel(cflat_ref, idx_ref, prune_ref, g_ref, c_ref, keep_ref, out_ref):
    """Fused chart init (softmax + gather) + chart-DP over all breaks.

    cflat_ref : (1, RC)          f32  VMEM  flattened cost parameter
    idx_ref   : (1, L)           i32  VMEM  gather index per chart lane (-1=pad)
    prune_ref : (1, 1)           f32  SMEM  pruning_cost scalar
    g_ref     : (nb, L, CAND*L)  bf16 VMEM  folded gather+scatter matrices
    c_ref     : (nb, 1, CAND*L)  f32  VMEM  candidate costs in dest-lane space
    keep_ref  : (nb, 1, L)       f32  VMEM  1.0 where lane is NOT a dest
    out_ref   : (1, L)           f32  VMEM  final flat chart
    """
    # ---- phase 1: chart init = softmax(cost.flatten()) gathered per cell ----
    c = cflat_ref[...]                                        # (1, RC)
    m = jnp.max(c, axis=1, keepdims=True)
    e = jnp.exp(c - m)
    p = e * pl.reciprocal(jnp.sum(e, axis=1, keepdims=True), approx=True)
    idx = idx_ref[...]                                        # (1, L); -1 = pad
    k_iota = lax.broadcasted_iota(jnp.int32, (RC, L), 0)
    onehot = (idx == k_iota).astype(jnp.float32)              # (RC, L)
    work = jnp.dot(p, onehot, preferred_element_type=jnp.float32)   # (1, L)

    # ---- phase 2: DP over breaks (strictly sequential, chart stays resident)
    prune = prune_ref[0, 0]                                   # SMEM scalar
    cst = c_ref[...] * prune                                  # hoisted: (nb,1,CAND*L)
    nb = g_ref.shape[0]

    # Static Python loop: nb is a compile-time constant, so every table index
    # below is a constant VMEM offset (no dynamic slicing of values).
    for step in range(nb):
        g = g_ref[step]                                       # (L, CAND*L) bf16
        # one MXU trip per break: all CAND candidate gathers + the scatter are
        # folded into this single matmul (dest lanes are the output lanes).
        v = jnp.dot(work.astype(jnp.bfloat16), g,
                    preferred_element_type=jnp.float32)       # (1, CAND*L)
        v = v - cst[step]                                     # (1, CAND*L)
        best = v[:, 0:L]
        for cand in range(1, CAND):                           # pure-VPU max
            best = jnp.maximum(best, v[:, cand * L:(cand + 1) * L])
        # non-dest lanes contribute 0 to `best`; dest lanes have keep == 0
        work = work * keep_ref[step] + best                   # (1, L)

    out_ref[...] = work


# --------------------------- pallas_call wrapper ------------------------------
def tclt_forward_pallas(cost, pruning_cost, row_ind, col_ind,
                        g_all, c_all, keep_all, key):
    # per-forward random permutations (torch.randperm equivalent)
    _, idx_pad = build_init_indices(row_ind, col_ind, key)
    cflat = cost.reshape(1, RC).astype(jnp.float32)
    idx = idx_pad.reshape(1, L)
    prune = jnp.reshape(pruning_cost, (1, 1)).astype(jnp.float32)

    chart = pl.pallas_call(
        _tclt_kernel,
        out_shape=jax.ShapeDtypeStruct((1, L), jnp.float32),
        in_specs=[pl.BlockSpec(memory_space=pltpu.MemorySpace.VMEM),   # cflat
                  pl.BlockSpec(memory_space=pltpu.MemorySpace.VMEM),   # idx
                  pl.BlockSpec(memory_space=pltpu.MemorySpace.SMEM),   # prune
                  pl.BlockSpec(memory_space=pltpu.MemorySpace.VMEM),   # G
                  pl.BlockSpec(memory_space=pltpu.MemorySpace.VMEM),   # C
                  pl.BlockSpec(memory_space=pltpu.MemorySpace.VMEM)],  # keep
        out_specs=pl.BlockSpec(memory_space=pltpu.MemorySpace.VMEM),
    )(cflat, idx, prune, g_all, c_all, keep_all)

    out_idx = jnp.array([b * N * N + (N - 1) * N + (N - 1) for b in range(B)],
                        dtype=jnp.int32)
    return chart[0, out_idx]                    # == mat[:, -1, -1]


# ------------------------------ glue (indices) --------------------------------
def build_init_indices(row_ind, col_ind, key):
    """Flat indices into softmax(cost.flatten()) for every chart cell.
    Batches >= 1 use fresh random permutations of row_ind/col_ind
    (torch.randperm equivalent).  Pad lanes get -1 (matches no one-hot row)."""
    # TODO(synk): torch.randperm uses the nondeterministic CUDA RNG; replaced
    # by deterministic jax.random.permutation.
    ind0 = row_ind[:, None] * RC_C + col_ind[None, :]               # (N, N)
    blocks = [ind0]
    keys = jax.random.split(key, 2 * (B - 1))
    for b in range(B - 1):
        r1 = jax.random.permutation(keys[2 * b], LEN_R)
        c1 = jax.random.permutation(keys[2 * b + 1], LEN_C)
        blocks.append(row_ind[r1][:, None] * RC_C + col_ind[c1][None, :])
    idx_all = jnp.stack(blocks, 0).reshape(-1).astype(jnp.int32)    # (BNN,)
    idx_pad = jnp.full((L,), -1, jnp.int32).at[:BNN].set(idx_all)
    return idx_all, idx_pad


def build_step_tables(t_indices, t_costs, t_breaks,
                      i_indices, i_costs, i_breaks):
    """Host-precomputed folded gather(+scatter) tables per break.

    For break step s, candidate c, a row with dest lane d and sources {l}:
        G[s, l, c*L + d] += 1          (one/two-hot column)
        C[s, 0, c*L + d]  = candidate cost (multiplied by prune in-kernel)
        keep[s, 0, d]     = 0
    Kernel update per break:
        v    = chart @ G[s] - C[s]*prune
        best = max over the CAND lane-blocks of v
        chart = chart*keep[s] + best
    NOTE: duplicate destinations inside one break would be SUMMED by the
    matmul (torch .put_ is last-write-wins); the synthetic tables have unique
    dests per break and we assert it.
    """
    G_list, C_list, K_list = [], [], []

    def new_step():
        return (np.zeros((L, CAND * L), np.float32),
                np.zeros((1, CAND * L), np.float32),
                np.ones((1, L), np.float32))

    def finish(G, C, K, dests):
        assert len(dests) <= L, "too many rows in a break"
        assert len(set(dests)) == len(dests), "duplicate dest inside a break"
        assert max(dests) < BNN
        G_list.append(G); C_list.append(C); K_list.append(K)

    for sl in t_breaks:            # max_c ( chart[src_c] - t_cost_c )
        ti = np.asarray(t_indices[sl]); tc = np.asarray(t_costs[sl])
        assert ti.shape[1] == 1 + CAND and int(ti.max()) < BNN
        G, C, K = new_step(); dests = []
        for r in range(ti.shape[0]):
            d = int(ti[r, 0]); dests.append(d)
            for c in range(CAND):
                G[int(ti[r, 1 + c]), c * L + d] += 1.0
                C[0, c * L + d] = tc[r, c]
            K[0, d] = 0.0
        finish(G, C, K, dests)

    for sl in i_breaks:            # max( s1+s2, s3+s4, s5 - ic0, s6 - ic1 )
        ii = np.asarray(i_indices[sl]); ic = np.asarray(i_costs[sl])
        assert ii.shape[1] == 7 and ic.shape[1] == 2 and int(ii.max()) < BNN
        G, C, K = new_step(); dests = []
        for r in range(ii.shape[0]):
            d = int(ii[r, 0]); dests.append(d)
            G[int(ii[r, 1]), 0 * L + d] += 1.0
            G[int(ii[r, 2]), 0 * L + d] += 1.0
            G[int(ii[r, 3]), 1 * L + d] += 1.0
            G[int(ii[r, 4]), 1 * L + d] += 1.0
            G[int(ii[r, 5]), 2 * L + d] += 1.0; C[0, 2 * L + d] = ic[r, 0]
            G[int(ii[r, 6]), 3 * L + d] += 1.0; C[0, 3 * L + d] = ic[r, 1]
            K[0, d] = 0.0
        finish(G, C, K, dests)

    g_all = np.stack(G_list, 0)                          # (nb, L, CAND*L)
    c_all = np.stack(C_list, 0)                          # (nb, 1, CAND*L)
    k_all = np.stack(K_list, 0)                          # (nb, 1, L)
    # G entries are exactly 0/1/2 -> exact in bf16 (halves the table DMA);
    # costs / keep masks stay f32 (tiny) so the VPU subtract/mask is exact.
    return (jnp.asarray(g_all, dtype=jnp.bfloat16),
            jnp.asarray(c_all, dtype=jnp.float32),
            jnp.asarray(k_all, dtype=jnp.float32))


# -------------------- pure-JAX reference (torch semantics) --------------------
def tclt_forward_ref(cost, pruning_cost, row_ind, col_ind,
                     t_indices, t_costs, t_breaks,
                     i_indices, i_costs, i_breaks, key):
    idx_all, _ = build_init_indices(row_ind, col_ind, key)
    cost_flat = jax.nn.softmax(cost.reshape(-1))
    mat_flat = cost_flat[idx_all]                            # full chart init
    t_c = jnp.asarray(t_costs) * pruning_cost
    i_c = jnp.asarray(i_costs) * pruning_cost
    t_idx = jnp.asarray(t_indices)
    i_idx = jnp.asarray(i_indices)
    for sl in t_breaks:
        vals = jnp.max(mat_flat[t_idx[sl, 1:]] - t_c[sl], axis=1)
        mat_flat = mat_flat.at[t_idx[sl, 0]].set(vals)
    for sl in i_breaks:
        sc = mat_flat[i_idx[sl, 1:]]
        sc2 = jnp.concatenate([sc[:, :2].sum(1, keepdims=True),
                               sc[:, 2:4].sum(1, keepdims=True),
                               sc[:, 4:] - i_c[sl]], axis=1)
        mat_flat = mat_flat.at[i_idx[sl, 0]].set(jnp.max(sc2, axis=1))
    return mat_flat.reshape(B, N, N)[:, -1, -1]


# --------------------------------- main ----------------------------------------
if __name__ == "__main__":
    # Deterministic synthetic __init__ arguments (dims, cost_ij, row/col_ind,
    # t_*/i_* tables).  t_depth / i_depth are unused by forward().
    rs = np.random.RandomState(0)
    cost_ij = rs.randn(RC_R, RC_C).astype(np.float32)
    row_ind = jnp.asarray(rs.permutation(RC_R)[:LEN_R].astype(np.int32))
    col_ind = jnp.asarray(rs.permutation(RC_C)[:LEN_C].astype(np.int32))

    def make_break(n_rows, n_src, forced_dests=()):
        forced = np.array(list(forced_dests), dtype=np.int64)
        pool = np.setdiff1d(np.arange(BNN), forced)
        extra = rs.choice(pool, size=n_rows - len(forced), replace=False)
        dests = np.concatenate([forced, extra])
        rows = []
        for d in dests:
            b = int(d) // (N * N)
            srcs = b * N * N + rs.randint(0, N * N, size=n_src)
            rows.append([int(d)] + srcs.tolist())
        return rows

    t_rows, t_breaks, start = [], [], 0
    for _ in range(2):
        rows = make_break(6, 4)
        t_rows += rows
        t_breaks.append(slice(start, start + len(rows)))
        start += len(rows)
    t_indices = np.array(t_rows, dtype=np.int64)
    t_costs = rs.rand(start, 4).astype(np.float32)

    i_rows, i_breaks, start = [], [], 0
    final_cells = [b * N * N + (N - 1) * N + (N - 1) for b in range(B)]
    for lvl in range(2):
        forced = final_cells if lvl == 1 else ()
        rows = make_break(5, 6, forced)
        i_rows += rows
        i_breaks.append(slice(start, start + len(rows)))
        start += len(rows)
    i_indices = np.array(i_rows, dtype=np.int64)
    i_costs = rs.rand(start, 2).astype(np.float32)

    # parameters (module __init__: cost = Parameter(cost_ij),
    # pruning_cost = Parameter((1.0,)); a non-trivial value is used here so the
    # in-kernel SMEM pruning_cost path is actually exercised by the check).
    cost = jnp.asarray(cost_ij)
    pruning_cost = jnp.float32(0.75)

    g_all, c_all, keep_all = build_step_tables(
        t_indices, t_costs, t_breaks, i_indices, i_costs, i_breaks)

    key = jax.random.PRNGKey(0)
    fwd = jax.jit(tclt_forward_pallas)
    vals = fwd(cost, pruning_cost, row_ind, col_ind,
               g_all, c_all, keep_all, key)
    vals = jax.block_until_ready(vals)

    ref = tclt_forward_ref(cost, pruning_cost, row_ind, col_ind,
                           t_indices, t_costs, t_breaks,
                           i_indices, i_costs, i_breaks, key)
    assert vals.shape == (B,)
    # tolerance covers the bf16 rounding of chart values on each MXU gather
    # pass (identical to the DEFAULT-precision f32 matmul behaviour).
    np.testing.assert_allclose(np.asarray(vals), np.asarray(ref),
                               rtol=5e-3, atol=5e-3)
    print("KERNEL_OK")
</pallas_src>

<mosaic_0001>
module attributes {stable_mosaic.version = 11 : i64} {
  func.func @_tclt_kernel(%arg0: memref<1x64xf32, #tpu.memory_space<vmem>>, %arg1: memref<1x128xi32, #tpu.memory_space<vmem>>, %arg2: memref<1x1xf32, #tpu.memory_space<smem>>, %arg3: memref<4x128x512xbf16, #tpu.memory_space<vmem>>, %arg4: memref<4x1x512xf32, #tpu.memory_space<vmem>>, %arg5: memref<4x1x128xf32, #tpu.memory_space<vmem>>, %arg6: memref<1x128xf32, #tpu.memory_space<vmem>>) attributes {dimension_semantics = [], scalar_prefetch = 0 : i64, scratch_operands = 0 : i64, tpu.core_type = #tpu.core_type<tc>} {
    %c0 = arith.constant 0 : index
    %c0_0 = arith.constant 0 : index
    %0 = vector.load %arg0[%c0, %c0_0] : memref<1x64xf32, #tpu.memory_space<vmem>>, vector<1x64xf32>
    %cst = arith.constant dense<0xFF800000> : vector<1xf32>
    %1 = vector.multi_reduction <maximumf>, %0, %cst [1] : vector<1x64xf32> to vector<1xf32>
    %2 = vector.shape_cast %1 : vector<1xf32> to vector<1x1xf32>
    %3 = vector.broadcast %2 : vector<1x1xf32> to vector<1x64xf32>
    %4 = arith.subf %0, %3 : vector<1x64xf32>
    %5 = math.exp %4 : vector<1x64xf32>
    %cst_1 = arith.constant dense<0.000000e+00> : vector<1xf32>
    %6 = vector.multi_reduction <add>, %5, %cst_1 [1] : vector<1x64xf32> to vector<1xf32>
    %7 = vector.shape_cast %6 : vector<1xf32> to vector<1x1xf32>
    %8 = tpu.reciprocal %7 {approx = true} : vector<1x1xf32> -> vector<1x1xf32>
    %9 = vector.broadcast %8 : vector<1x1xf32> to vector<1x64xf32>
    %10 = arith.mulf %5, %9 : vector<1x64xf32>
    %c0_2 = arith.constant 0 : index
    %c0_3 = arith.constant 0 : index
    %11 = vector.load %arg1[%c0_2, %c0_3] : memref<1x128xi32, #tpu.memory_space<vmem>>, vector<1x128xi32>
    %12 = tpu.iota {dimensions = array<i32: 0>} : vector<64x128xi32>
    %13 = vector.broadcast %11 : vector<1x128xi32> to vector<64x128xi32>
    %14 = arith.cmpi eq, %13, %12 : vector<64x128xi32>
    %15 = arith.extui %14 : vector<64x128xi1> to vector<64x128xi32>
    %16 = arith.sitofp %15 : vector<64x128xi32> to vector<64x128xf32>
    %cst_4 = arith.constant dense<0.000000e+00> : vector<1x128xf32>
    %17 = tpu.matmul %10, %16, %cst_4 {dimension_numbers = #tpu.dot_dimension_numbers<[1], [0], [0], [1], [0, 0, 1, 1], [], []>} : vector<1x64xf32>, vector<64x128xf32>, vector<1x128xf32> -> vector<1x128xf32>
    %c0_5 = arith.constant 0 : index
    %c0_6 = arith.constant 0 : index
    %18 = memref.load %arg2[%c0_5, %c0_6] : memref<1x1xf32, #tpu.memory_space<smem>>
    %c0_7 = arith.constant 0 : index
    %c0_8 = arith.constant 0 : index
    %c0_9 = arith.constant 0 : index
    %19 = vector.load %arg4[%c0_7, %c0_8, %c0_9] : memref<4x1x512xf32, #tpu.memory_space<vmem>>, vector<4x1x512xf32>
    %20 = vector.broadcast %18 : f32 to vector<4x1x512xf32>
    %21 = arith.mulf %19, %20 : vector<4x1x512xf32>
    %c0_10 = arith.constant 0 : index
    %c0_11 = arith.constant 0 : index
    %c0_12 = arith.constant 0 : index
    %22 = vector.load %arg3[%c0_10, %c0_11, %c0_12] : memref<4x128x512xbf16, #tpu.memory_space<vmem>>, vector<1x128x512xbf16>
    %23 = vector.shape_cast %22 : vector<1x128x512xbf16> to vector<128x512xbf16>
    %24 = arith.truncf %17 : vector<1x128xf32> to vector<1x128xbf16>
    %cst_13 = arith.constant dense<0.000000e+00> : vector<1x512xf32>
    %25 = tpu.matmul %24, %23, %cst_13 {dimension_numbers = #tpu.dot_dimension_numbers<[1], [0], [0], [1], [0, 0, 1, 1], [], []>} : vector<1x128xbf16>, vector<128x512xbf16>, vector<1x512xf32> -> vector<1x512xf32>
    %26 = vector.extract_strided_slice %21 {offsets = [0, 0, 0], sizes = [1, 1, 512], strides = [1, 1, 1]} : vector<4x1x512xf32> to vector<1x1x512xf32>
    %27 = vector.shape_cast %26 : vector<1x1x512xf32> to vector<1x512xf32>
    %28 = arith.subf %25, %27 : vector<1x512xf32>
    %29 = vector.extract_strided_slice %28 {offsets = [0, 0], sizes = [1, 128], strides = [1, 1]} : vector<1x512xf32> to vector<1x128xf32>
    %30 = vector.extract_strided_slice %28 {offsets = [0, 128], sizes = [1, 128], strides = [1, 1]} : vector<1x512xf32> to vector<1x128xf32>
    %31 = arith.maximumf %29, %30 : vector<1x128xf32>
    %32 = vector.extract_strided_slice %28 {offsets = [0, 256], sizes = [1, 128], strides = [1, 1]} : vector<1x512xf32> to vector<1x128xf32>
    %33 = arith.maximumf %31, %32 : vector<1x128xf32>
    %34 = vector.extract_strided_slice %28 {offsets = [0, 384], sizes = [1, 128], strides = [1, 1]} : vector<1x512xf32> to vector<1x128xf32>
    %35 = arith.maximumf %33, %34 : vector<1x128xf32>
    %c0_14 = arith.constant 0 : index
    %c0_15 = arith.constant 0 : index
    %c0_16 = arith.constant 0 : index
    %36 = vector.load %arg5[%c0_14, %c0_15, %c0_16] : memref<4x1x128xf32, #tpu.memory_space<vmem>>, vector<1x1x128xf32>
    %37 = vector.shape_cast %36 : vector<1x1x128xf32> to vector<1x128xf32>
    %38 = arith.mulf %17, %37 : vector<1x128xf32>
    %39 = arith.addf %38, %35 : vector<1x128xf32>
    %c1 = arith.constant 1 : index
    %c0_17 = arith.constant 0 : index
    %c0_18 = arith.constant 0 : index
    %40 = vector.load %arg3[%c1, %c0_17, %c0_18] : memref<4x128x512xbf16, #tpu.memory_space<vmem>>, vector<1x128x512xbf16>
    %41 = vector.shape_cast %40 : vector<1x128x512xbf16> to vector<128x512xbf16>
    %42 = arith.truncf %39 : vector<1x128xf32> to vector<1x128xbf16>
    %cst_19 = arith.constant dense<0.000000e+00> : vector<1x512xf32>
    %43 = tpu.matmul %42, %41, %cst_19 {dimension_numbers = #tpu.dot_dimension_numbers<[1], [0], [0], [1], [0, 0, 1, 1], [], []>} : vector<1x128xbf16>, vector<128x512xbf16>, vector<1x512xf32> -> vector<1x512xf32>
    %44 = vector.extract_strided_slice %21 {offsets = [1, 0, 0], sizes = [1, 1, 512], strides = [1, 1, 1]} : vector<4x1x512xf32> to vector<1x1x512xf32>
    %45 = vector.shape_cast %44 : vector<1x1x512xf32> to vector<1x512xf32>
    %46 = arith.subf %43, %45 : vector<1x512xf32>
    %47 = vector.extract_strided_slice %46 {offsets = [0, 0], sizes = [1, 128], strides = [1, 1]} : vector<1x512xf32> to vector<1x128xf32>
    %48 = vector.extract_strided_slice %46 {offsets = [0, 128], sizes = [1, 128], strides = [1, 1]} : vector<1x512xf32> to vector<1x128xf32>
    %49 = arith.maximumf %47, %48 : vector<1x128xf32>
    %50 = vector.extract_strided_slice %46 {offsets = [0, 256], sizes = [1, 128], strides = [1, 1]} : vector<1x512xf32> to vector<1x128xf32>
    %51 = arith.maximumf %49, %50 : vector<1x128xf32>
    %52 = vector.extract_strided_slice %46 {offsets = [0, 384], sizes = [1, 128], strides = [1, 1]} : vector<1x512xf32> to vector<1x128xf32>
    %53 = arith.maximumf %51, %52 : vector<1x128xf32>
    %c1_20 = arith.constant 1 : index
    %c0_21 = arith.constant 0 : index
    %c0_22 = arith.constant 0 : index
    %54 = vector.load %arg5[%c1_20, %c0_21, %c0_22] : memref<4x1x128xf32, #tpu.memory_space<vmem>>, vector<1x1x128xf32>
    %55 = vector.shape_cast %54 : vector<1x1x128xf32> to vector<1x128xf32>
    %56 = arith.mulf %39, %55 : vector<1x128xf32>
    %57 = arith.addf %56, %53 : vector<1x128xf32>
    %c2 = arith.constant 2 : index
    %c0_23 = arith.constant 0 : index
    %c0_24 = arith.constant 0 : index
    %58 = vector.load %arg3[%c2, %c0_23, %c0_24] : memref<4x128x512xbf16, #tpu.memory_space<vmem>>, vector<1x128x512xbf16>
    %59 = vector.shape_cast %58 : vector<1x128x512xbf16> to vector<128x512xbf16>
    %60 = arith.truncf %57 : vector<1x128xf32> to vector<1x128xbf16>
    %cst_25 = arith.constant dense<0.000000e+00> : vector<1x512xf32>
    %61 = tpu.matmul %60, %59, %cst_25 {dimension_numbers = #tpu.dot_dimension_numbers<[1], [0], [0], [1], [0, 0, 1, 1], [], []>} : vector<1x128xbf16>, vector<128x512xbf16>, vector<1x512xf32> -> vector<1x512xf32>
    %62 = vector.extract_strided_slice %21 {offsets = [2, 0, 0], sizes = [1, 1, 512], strides = [1, 1, 1]} : vector<4x1x512xf32> to vector<1x1x512xf32>
    %63 = vector.shape_cast %62 : vector<1x1x512xf32> to vector<1x512xf32>
    %64 = arith.subf %61, %63 : vector<1x512xf32>
    %65 = vector.extract_strided_slice %64 {offsets = [0, 0], sizes = [1, 128], strides = [1, 1]} : vector<1x512xf32> to vector<1x128xf32>
    %66 = vector.extract_strided_slice %64 {offsets = [0, 128], sizes = [1, 128], strides = [1, 1]} : vector<1x512xf32> to vector<1x128xf32>
    %67 = arith.maximumf %65, %66 : vector<1x128xf32>
    %68 = vector.extract_strided_slice %64 {offsets = [0, 256], sizes = [1, 128], strides = [1, 1]} : vector<1x512xf32> to vector<1x128xf32>
    %69 = arith.maximumf %67, %68 : vector<1x128xf32>
    %70 = vector.extract_strided_slice %64 {offsets = [0, 384], sizes = [1, 128], strides = [1, 1]} : vector<1x512xf32> to vector<1x128xf32>
    %71 = arith.maximumf %69, %70 : vector<1x128xf32>
    %c2_26 = arith.constant 2 : index
    %c0_27 = arith.constant 0 : index
    %c0_28 = arith.constant 0 : index
    %72 = vector.load %arg5[%c2_26, %c0_27, %c0_28] : memref<4x1x128xf32, #tpu.memory_space<vmem>>, vector<1x1x128xf32>
    %73 = vector.shape_cast %72 : vector<1x1x128xf32> to vector<1x128xf32>
    %74 = arith.mulf %57, %73 : vector<1x128xf32>
    %75 = arith.addf %74, %71 : vector<1x128xf32>
    %c3 = arith.constant 3 : index
    %c0_29 = arith.constant 0 : index
    %c0_30 = arith.constant 0 : index
    %76 = vector.load %arg3[%c3, %c0_29, %c0_30] : memref<4x128x512xbf16, #tpu.memory_space<vmem>>, vector<1x128x512xbf16>
    %77 = vector.shape_cast %76 : vector<1x128x512xbf16> to vector<128x512xbf16>
    %78 = arith.truncf %75 : vector<1x128xf32> to vector<1x128xbf16>
    %cst_31 = arith.constant dense<0.000000e+00> : vector<1x512xf32>
    %79 = tpu.matmul %78, %77, %cst_31 {dimension_numbers = #tpu.dot_dimension_numbers<[1], [0], [0], [1], [0, 0, 1, 1], [], []>} : vector<1x128xbf16>, vector<128x512xbf16>, vector<1x512xf32> -> vector<1x512xf32>
    %80 = vector.extract_strided_slice %21 {offsets = [3, 0, 0], sizes = [1, 1, 512], strides = [1, 1, 1]} : vector<4x1x512xf32> to vector<1x1x512xf32>
    %81 = vector.shape_cast %80 : vector<1x1x512xf32> to vector<1x512xf32>
    %82 = arith.subf %79, %81 : vector<1x512xf32>
    %83 = vector.extract_strided_slice %82 {offsets = [0, 0], sizes = [1, 128], strides = [1, 1]} : vector<1x512xf32> to vector<1x128xf32>
    %84 = vector.extract_strided_slice %82 {offsets = [0, 128], sizes = [1, 128], strides = [1, 1]} : vector<1x512xf32> to vector<1x128xf32>
    %85 = arith.maximumf %83, %84 : vector<1x128xf32>
    %86 = vector.extract_strided_slice %82 {offsets = [0, 256], sizes = [1, 128], strides = [1, 1]} : vector<1x512xf32> to vector<1x128xf32>
    %87 = arith.maximumf %85, %86 : vector<1x128xf32>
    %88 = vector.extract_strided_slice %82 {offsets = [0, 384], sizes = [1, 128], strides = [1, 1]} : vector<1x512xf32> to vector<1x128xf32>
    %89 = arith.maximumf %87, %88 : vector<1x128xf32>
    %c3_32 = arith.constant 3 : index
    %c0_33 = arith.constant 0 : index
    %c0_34 = arith.constant 0 : index
    %90 = vector.load %arg5[%c3_32, %c0_33, %c0_34] : memref<4x1x128xf32, #tpu.memory_space<vmem>>, vector<1x1x128xf32>
    %91 = vector.shape_cast %90 : vector<1x1x128xf32> to vector<1x128xf32>
    %92 = arith.mulf %75, %91 : vector<1x128xf32>
    %93 = arith.addf %92, %89 : vector<1x128xf32>
    %c0_35 = arith.constant 0 : index
    %c0_36 = arith.constant 0 : index
    %94 = vector.load %arg6[%c0_35, %c0_36] : memref<1x128xf32, #tpu.memory_space<vmem>>, vector<1x128xf32>
    tpu.vector_store %arg6[%c0_35, %c0_36], %93 {strides = array<i32>} : memref<1x128xf32, #tpu.memory_space<vmem>>, vector<1x128xf32>,
    return
  }
}

</mosaic_0001>

<llo_original>
// kernel: tclt_forward_pallas.1
$region0: #{tclt_forward_pallas.1}
  #allocation0 [shape = 'u32[]', space=smem, size = 0x4, offset = 0x4, fixed_abs, tag = 'smem constant byte address 0x4 - core index']
  #allocation1 [shape = 'u32[144,128]{1,0:T(1,128)}', space=vmem, size = 0x12000, scoped, tag = 'internal scratch']
  #allocation2 [shape = 'f32[1,1]{1,0:T(1,128)S(6)}', space=smem, size = 0x200, scoped, tag = 'scoped memory for tclt_forward_pallas.1']
  %s0 = inlined_call_operand.vmem [shape: f32[1,64], index: 0, kind: input, shape index: {}]
  %s1 = inlined_call_operand.vmem [shape: s32[1,128], index: 1, kind: input, shape index: {}]
  %s2 = inlined_call_operand.<no memory space> [shape: f32[1,1], index: 2, kind: input, shape index: {}]
  %s3 = inlined_call_operand.vmem [shape: bf16[4,128,512], index: 3, kind: input, shape index: {}]
  %s4 = inlined_call_operand.vmem [shape: f32[4,1,512], index: 4, kind: input, shape index: {}]
  %s5 = inlined_call_operand.vmem [shape: f32[4,1,128], index: 5, kind: input, shape index: {}]
  %s6 = inlined_call_operand.vmem [shape: f32[1,128], index: 6, kind: output, shape index: {}]
  %s7 = sld [smem:[#allocation0]]
  $region34: #{tclt_forward_pallas.1} parent=0
    _
  %s9 = ssub.s32 1, %s7
  %s10 = scalar_select 0, %s9, %s7
  %11 = sst [smem:[#allocation2]] %s2
  // Predicated region
  $region2: #{tclt_forward_pallas.1} parent=0 // pred_check
    _
  $region3: #{tclt_forward_pallas.1} parent=0 // pred_check_branch
    %13 = sbr.rel (0) target = $region5
  $region4: #{tclt_forward_pallas.1} parent=0 // pred_region
    _
  $region5: #{tclt_forward_pallas.1} parent=0 // pred_fallthru
    _
  // Predicated region
  $region6: #{tclt_forward_pallas.1} parent=0 // pred_check
    _
  $region7: #{tclt_forward_pallas.1} parent=0 // pred_check_branch
    %15 = sbr.rel (0) target = $region9
  $region8: #{tclt_forward_pallas.1} parent=0 // pred_region
    _
  $region9: #{tclt_forward_pallas.1} parent=0 // pred_fallthru
    _
  // Predicated region
  $region10: #{tclt_forward_pallas.1} parent=0 // pred_check
    _
  $region11: #{tclt_forward_pallas.1} parent=0 // pred_check_branch
    %17 = sbr.rel (0) target = $region13
  $region12: #{tclt_forward_pallas.1} parent=0 // pred_region
    _
  $region13: #{tclt_forward_pallas.1} parent=0 // pred_fallthru
    _
  // Predicated region
  $region14: #{tclt_forward_pallas.1} parent=0 // pred_check
    _
  $region15: #{tclt_forward_pallas.1} parent=0 // pred_check_branch
    %19 = sbr.rel (0) target = $region17
  $region16: #{tclt_forward_pallas.1} parent=0 // pred_region
    _
  $region17: #{tclt_forward_pallas.1} parent=0 // pred_fallthru
    _
  // Predicated region
  $region18: #{tclt_forward_pallas.1} parent=0 // pred_check
    _
  $region19: #{tclt_forward_pallas.1} parent=0 // pred_check_branch
    %21 = sbr.rel (0) target = $region21
  $region20: #{tclt_forward_pallas.1} parent=0 // pred_region
    _
  $region21: #{tclt_forward_pallas.1} parent=0 // pred_fallthru
    _
  // Predicated region
  $region22: #{tclt_forward_pallas.1} parent=0 // pred_check
    _
  $region23: #{tclt_forward_pallas.1} parent=0 // pred_check_branch
    %23 = sbr.rel (0) target = $region25
  $region24: #{tclt_forward_pallas.1} parent=0 // pred_region
    _
  $region25: #{tclt_forward_pallas.1} parent=0 // pred_fallthru
    _
  %v25 = vld [vmem:[%s0] sm:$0x1]
  %vm26 = vcmask 516096
  %v27 = vsel %vm26, %v25, -inf
  %28 = vmax.xlane.f32.xlu0 %v27
  %v29 = vpop.xlane.xlu0 %28
  %v30 = vsub.f32 %v25, %v29
  %v31 = vmul.f32 %v30, 1.442695
  %v32 = vpow.pop %v31
  %v33 = vsel %vm26, %v32, 0.0
  %34 = vadd.xlane.f32.xlu0 %v33
  %v35 = vpop.xlane.xlu0 %34
  %v36 = vrcp.pop %v35
  %v37 = vmul.f32 %v32, %v36
  %v38 = vld [vmem:[%s1] sm:$0x1]
  %v39 = vlaneseq
  %v40 = vshrl.u32 %v39, 7
  %v41 = vadd.s32 %v40, 8
  %v42 = vadd.s32 %v40, 16
  %v43 = vadd.s32 %v40, 24
  %v44 = vadd.s32 %v40, 32
  %v45 = vadd.s32 %v40, 40
  %v46 = vadd.s32 %v40, 48
  %v47 = vadd.s32 %v40, 56
  %v48 = vlaneseq
  %v49 = vshrl.u32 %v48, 7
  %v50 = vsub.s32 0, %v49
  %v51 = vrot.slane %v38, %v50
  %vm52 = vcmp.eq.s32.totalorder %v51, %v40
  %vm53 = vcmp.eq.s32.totalorder %v51, %v41
  %vm54 = vcmp.eq.s32.totalorder %v51, %v42
  %vm55 = vcmp.eq.s32.totalorder %v51, %v43
  %vm56 = vcmp.eq.s32.totalorder %v51, %v44
  %vm57 = vcmp.eq.s32.totalorder %v51, %v45
  %vm58 = vcmp.eq.s32.totalorder %v51, %v46
  %vm59 = vcmp.eq.s32.totalorder %v51, %v47
  %v60 = vsel %vm52, 1, 0
  %v61 = vsel %vm53, 1, 0
  %v62 = vsel %vm54, 1, 0
  %v63 = vsel %vm55, 1, 0
  %v64 = vsel %vm56, 1, 0
  %v65 = vsel %vm57, 1, 0
  %v66 = vsel %vm58, 1, 0
  %v67 = vsel %vm59, 1, 0
  %v68 = vcvt.s32.f32 %v60
  %v69 = vcvt.s32.f32 %v61
  %v70 = vcvt.s32.f32 %v62
  %v71 = vcvt.s32.f32 %v63
  %v72 = vcvt.s32.f32 %v64
  %v73 = vcvt.s32.f32 %v65
  %v74 = vcvt.s32.f32 %v66
  %v75 = vcvt.s32.f32 %v67
  %vm76 = vcmask 523264
  %v78 = vsel %vm76, %v37, 0
  %80 = vmatprep.subr.mxu0 0.0
  %81 = vmatpush1.msra.mxu0 %v68
  %82 = vmatprep.subr.mxu0 0.0
  %83 = vmatpush1.msra.mxu0 %v69
  %84 = vmatprep.subr.mxu0 0.0
  %85 = vmatpush1.msra.mxu0 %v70
  %86 = vmatprep.subr.mxu0 0.0
  %87 = vmatpush1.msra.mxu0 %v71
  %88 = vmatprep.subr.mxu0 0.0
  %89 = vmatpush1.msra.mxu0 %v72
  %90 = vmatprep.subr.mxu0 0.0
  %91 = vmatpush1.msra.mxu0 %v73
  %92 = vmatprep.subr.mxu0 0.0
  %93 = vmatpush1.msra.mxu0 %v74
  %94 = vmatprep.subr.mxu0 0.0
  %95 = vmatpush1.msra.mxu0 %v75
  %96 = vmatprep.subr.mxu0 0.0
  %97 = vmatpush1.msra.mxu0 0.0
  %98 = vmatprep.subr.mxu0 0.0
  %99 = vmatpush1.msra.mxu0 0.0
  %100 = vmatprep.subr.mxu0 0.0
  %101 = vmatpush1.msra.mxu0 0.0
  %102 = vmatprep.subr.mxu0 0.0
  %103 = vmatpush1.msra.mxu0 0.0
  %104 = vmatprep.subr.mxu0 0.0
  %105 = vmatpush1.msra.mxu0 0.0
  %106 = vmatprep.subr.mxu0 0.0
  %107 = vmatpush1.msra.mxu0 0.0
  %108 = vmatprep.subr.mxu0 0.0
  %109 = vmatpush1.msra.mxu0 0.0
  %110 = vmatprep.subr.mxu0 0.0
  %111 = vmatpush1.msra.mxu0 0.0
  %112 = vmatprep.subr.mxu0 0.0
  %113 = vmatpush1.msra.mxu0 0.0
  %114 = vmatprep.subr.mxu0 0.0
  %115 = vmatpush1.msra.mxu0 0.0
  %116 = vmatprep.subr.mxu0 0.0
  %117 = vmatpush1.msra.mxu0 0.0
  %118 = vmatprep.subr.mxu0 0.0
  %119 = vmatpush1.msra.mxu0 0.0
  %120 = vmatprep.subr.mxu0 0.0
  %121 = vmatpush1.msra.mxu0 0.0
  %122 = vmatprep.subr.mxu0 0.0
  %123 = vmatpush1.msra.mxu0 0.0
  %124 = vmatprep.subr.mxu0 0.0
  %125 = vmatpush1.msra.mxu0 0.0
  %126 = vmatprep.subr.mxu0 0.0
  %127 = vmatpush1.msra.mxu0 0.0
  %128 = vmatprep.subr.mxu0 0.0
  %129 = vmatpush1.msra.mxu0 0.0
  %130 = vmatprep.subr.mxu0 0.0
  %131 = vmatpush1.msra.mxu0 0.0
  %132 = vmatprep.subr.mxu0 0.0
  %133 = vmatpush1.msra.mxu0 0.0
  %134 = vmatprep.subr.mxu0 0.0
  %135 = vmatpush1.msra.mxu0 0.0
  %136 = vmatprep.subr.mxu0 0.0
  %137 = vmatpush1.msra.mxu0 0.0
  %138 = vmatprep.subr.mxu0 0.0
  %139 = vmatpush1.msra.mxu0 0.0
  %140 = vmatprep.subr.mxu0 0.0
  %141 = vmatpush1.msra.mxu0 0.0
  %142 = vmatprep.subr.mxu0 0.0
  %143 = vmatpush1.msra.mxu0 0.0
  %144 = vmatprep.mubr.f32.mxu0 0.0
  %145 = vmatmul.mubr.f32.gmra.mrb[0].mxu0 %v78
  %v146 = vpop.f32.mrb[0].mxu0
  %v147 = vadd.f32 0.0, %v146
  %v148 = vpop.f32.mrb[0].mxu0
  %149 = vdwg.mxu0
  %s150 = sld [smem:[#allocation2]]
  %v151 = vld [vmem:[%s4] sm:$0xf]
  %v152 = vld [vmem:[%s4 + $0x4] sm:$0xf]
  %v153 = vld [vmem:[%s4 + $0x8] sm:$0xf]
  %v154 = vld [vmem:[%s4 + $0xc] sm:$0xf]
  %v155 = vstv %s150
  %v156 = vmul.f32 %v151, %v155
  %v157 = vmul.f32 %v152, %v155
  %v158 = vmul.f32 %v153, %v155
  %v159 = vmul.f32 %v154, %v155
  %v160 = vld [vmem:[%s3] sm:$0xff]
  %v161 = vld [vmem:[%s3 + $0x8] sm:$0xff]
  %v162 = vld [vmem:[%s3 + $0x10] sm:$0xff]
  %v163 = vld [vmem:[%s3 + $0x18] sm:$0xff]
  %v164 = vld [vmem:[%s3 + $0x20] sm:$0xff]
  %v165 = vld [vmem:[%s3 + $0x28] sm:$0xff]
  %v166 = vld [vmem:[%s3 + $0x30] sm:$0xff]
  %v167 = vld [vmem:[%s3 + $0x38] sm:$0xff]
  %v168 = vld [vmem:[%s3 + $0x40] sm:$0xff]
  %v169 = vld [vmem:[%s3 + $0x48] sm:$0xff]
  %v170 = vld [vmem:[%s3 + $0x50] sm:$0xff]
  %v171 = vld [vmem:[%s3 + $0x58] sm:$0xff]
  %v172 = vld [vmem:[%s3 + $0x60] sm:$0xff]
  %v173 = vld [vmem:[%s3 + $0x68] sm:$0xff]
  %v174 = vld [vmem:[%s3 + $0x70] sm:$0xff]
  %v175 = vld [vmem:[%s3 + $0x78] sm:$0xff]
  %v176 = vld [vmem:[%s3 + $0x80] sm:$0xff]
  %v177 = vld [vmem:[%s3 + $0x88] sm:$0xff]
  %v178 = vld [vmem:[%s3 + $0x90] sm:$0xff]
  %v179 = vld [vmem:[%s3 + $0x98] sm:$0xff]
  %v180 = vld [vmem:[%s3 + $0xa0] sm:$0xff]
  %v181 = vld [vmem:[%s3 + $0xa8] sm:$0xff]
  %v182 = vld [vmem:[%s3 + $0xb0] sm:$0xff]
  %v183 = vld [vmem:[%s3 + $0xb8] sm:$0xff]
  %v184 = vld [vmem:[%s3 + $0xc0] sm:$0xff]
  %v185 = vld [vmem:[%s3 + $0xc8] sm:$0xff]
  %v186 = vld [vmem:[%s3 + $0xd0] sm:$0xff]
  %v187 = vld [vmem:[%s3 + $0xd8] sm:$0xff]
  %v188 = vld [vmem:[%s3 + $0xe0] sm:$0xff]
  %v189 = vld [vmem:[%s3 + $0xe8] sm:$0xff]
  %v190 = vld [vmem:[%s3 + $0xf0] sm:$0xff]
  %v191 = vld [vmem:[%s3 + $0xf8] sm:$0xff]
  %v192 = vpack.c.bf16 %v147, %v147
  %v225 = vunpack.c.l.b16 %v160
  %v226 = vunpack.c.h.b16 %v160
  %v227 = vunpack.c.l.b16 %v161
  %v228 = vunpack.c.h.b16 %v161
  %v229 = vunpack.c.l.b16 %v162
  %v230 = vunpack.c.h.b16 %v162
  %v231 = vunpack.c.l.b16 %v163
  %v232 = vunpack.c.h.b16 %v163
  %v233 = vunpack.c.l.b16 %v164
  %v234 = vunpack.c.h.b16 %v164
  %v235 = vunpack.c.l.b16 %v165
  %v236 = vunpack.c.h.b16 %v165
  %v237 = vunpack.c.l.b16 %v166
  %v238 = vunpack.c.h.b16 %v166
  %v239 = vunpack.c.l.b16 %v167
  %v240 = vunpack.c.h.b16 %v167
  %v241 = vunpack.c.l.b16 %v168
  %v242 = vunpack.c.h.b16 %v168
  %v243 = vunpack.c.l.b16 %v169
  %v244 = vunpack.c.h.b16 %v169
  %v245 = vunpack.c.l.b16 %v170
  %v246 = vunpack.c.h.b16 %v170
  %v247 = vunpack.c.l.b16 %v171
  %v248 = vunpack.c.h.b16 %v171
  %v249 = vunpack.c.l.b16 %v172
  %v250 = vunpack.c.h.b16 %v172
  %v251 = vunpack.c.l.b16 %v173
  %v252 = vunpack.c.h.b16 %v173
  %v253 = vunpack.c.l.b16 %v174
  %v254 = vunpack.c.h.b16 %v174
  %v255 = vunpack.c.l.b16 %v175
  %v256 = vunpack.c.h.b16 %v175
  %v257 = vunpack.c.l.b16 %v176
  %v258 = vunpack.c.h.b16 %v176
  %v259 = vunpack.c.l.b16 %v177
  %v260 = vunpack.c.h.b16 %v177
  %v261 = vunpack.c.l.b16 %v178
  %v262 = vunpack.c.h.b16 %v178
  %v263 = vunpack.c.l.b16 %v179
  %v264 = vunpack.c.h.b16 %v179
  %v265 = vunpack.c.l.b16 %v180
  %v266 = vunpack.c.h.b16 %v180
  %v267 = vunpack.c.l.b16 %v181
  %v268 = vunpack.c.h.b16 %v181
  %v269 = vunpack.c.l.b16 %v182
  %v270 = vunpack.c.h.b16 %v182
  %v271 = vunpack.c.l.b16 %v183
  %v272 = vunpack.c.h.b16 %v183
  %v273 = vunpack.c.l.b16 %v184
  %v274 = vunpack.c.h.b16 %v184
  %v275 = vunpack.c.l.b16 %v185
  %v276 = vunpack.c.h.b16 %v185
  %v277 = vunpack.c.l.b16 %v186
  %v278 = vunpack.c.h.b16 %v186
  %v279 = vunpack.c.l.b16 %v187
  %v280 = vunpack.c.h.b16 %v187
  %v281 = vunpack.c.l.b16 %v188
  %v282 = vunpack.c.h.b16 %v188
  %v283 = vunpack.c.l.b16 %v189
  %v284 = vunpack.c.h.b16 %v189
  %v285 = vunpack.c.l.b16 %v190
  %v286 = vunpack.c.h.b16 %v190
  %v287 = vunpack.c.l.b16 %v191
  %v288 = vunpack.c.h.b16 %v191
  %v289 = vpack.c.b16 %v229, %v225
  %v290 = vpack.c.b16 %v230, %v226
  %v291 = vpack.c.b16 %v231, %v227
  %v292 = vpack.c.b16 %v232, %v228
  %v293 = vpack.c.b16 %v237, %v233
  %v294 = vpack.c.b16 %v238, %v234
  %v295 = vpack.c.b16 %v239, %v235
  %v296 = vpack.c.b16 %v240, %v236
  %v297 = vpack.c.b16 %v245, %v241
  %v298 = vpack.c.b16 %v246, %v242
  %v299 = vpack.c.b16 %v247, %v243
  %v300 = vpack.c.b16 %v248, %v244
  %v301 = vpack.c.b16 %v253, %v249
  %v302 = vpack.c.b16 %v254, %v250
  %v303 = vpack.c.b16 %v255, %v251
  %v304 = vpack.c.b16 %v256, %v252
  %v305 = vpack.c.b16 %v261, %v257
  %v306 = vpack.c.b16 %v262, %v258
  %v307 = vpack.c.b16 %v263, %v259
  %v308 = vpack.c.b16 %v264, %v260
  %v309 = vpack.c.b16 %v269, %v265
  %v310 = vpack.c.b16 %v270, %v266
  %v311 = vpack.c.b16 %v271, %v267
  %v312 = vpack.c.b16 %v272, %v268
  %v313 = vpack.c.b16 %v277, %v273
  %v314 = vpack.c.b16 %v278, %v274
  %v315 = vpack.c.b16 %v279, %v275
  %v316 = vpack.c.b16 %v280, %v276
  %v317 = vpack.c.b16 %v285, %v281
  %v318 = vpack.c.b16 %v286, %v282
  %v319 = vpack.c.b16 %v287, %v283
  %v320 = vpack.c.b16 %v288, %v284
  %353 = vmatprep.subr.bf16.mxu0 %v290
  %354 = vmatpush1.bf16.msra.mxu0 %v289
  %355 = vmatprep.subr.bf16.mxu0 %v294
  %356 = vmatpush1.bf16.msra.mxu0 %v293
  %357 = vmatprep.subr.bf16.mxu0 %v298
  %358 = vmatpush1.bf16.msra.mxu0 %v297
  %359 = vmatprep.subr.bf16.mxu0 %v302
  %360 = vmatpush1.bf16.msra.mxu0 %v301
  %361 = vmatprep.subr.bf16.mxu0 %v306
  %362 = vmatpush1.bf16.msra.mxu0 %v305
  %363 = vmatprep.subr.bf16.mxu0 %v310
  %364 = vmatpush1.bf16.msra.mxu0 %v309
  %365 = vmatprep.subr.bf16.mxu0 %v314
  %366 = vmatpush1.bf16.msra.mxu0 %v313
  %367 = vmatprep.subr.bf16.mxu0 %v318
  %368 = vmatpush1.bf16.msra.mxu0 %v317
  %369 = vmatprep.subr.bf16.mxu0 0
  %370 = vmatpush1.bf16.msra.mxu0 0
  %371 = vmatprep.subr.bf16.mxu0 0
  %372 = vmatpush1.bf16.msra.mxu0 0
  %373 = vmatprep.subr.bf16.mxu0 0
  %374 = vmatpush1.bf16.msra.mxu0 0
  %375 = vmatprep.subr.bf16.mxu0 0
  %376 = vmatpush1.bf16.msra.mxu0 0
  %377 = vmatprep.subr.bf16.mxu0 0
  %378 = vmatpush1.bf16.msra.mxu0 0
  %379 = vmatprep.subr.bf16.mxu0 0
  %380 = vmatpush1.bf16.msra.mxu0 0
  %381 = vmatprep.subr.bf16.mxu0 0
  %382 = vmatpush1.bf16.msra.mxu0 0
  %383 = vmatprep.subr.bf16.mxu0 0
  %384 = vmatpush1.bf16.msra.mxu0 0
  %385 = vmatprep.mubr.bf16.mxu0 0
  %386 = vmatmul.mubr.bf16.gmra.mrb[0].mxu0 %v192
  %v387 = vpop.f32.mrb[0].mxu0
  %v388 = vadd.f32 0.0, %v387
  %v389 = vpop.f32.mrb[0].mxu0
  %v390 = vadd.f32 0.0, %v389
  %v391 = vpop.f32.mrb[0].mxu0
  %v392 = vpop.f32.mrb[0].mxu0
  %393 = vdwg.mxu0
  %394 = vmatprep.subr.bf16.mxu0 %v292
  %395 = vmatpush1.bf16.msra.mxu0 %v291
  %396 = vmatprep.subr.bf16.mxu0 %v296
  %397 = vmatpush1.bf16.msra.mxu0 %v295
  %398 = vmatprep.subr.bf16.mxu0 %v300
  %399 = vmatpush1.bf16.msra.mxu0 %v299
  %400 = vmatprep.subr.bf16.mxu0 %v304
  %401 = vmatpush1.bf16.msra.mxu0 %v303
  %402 = vmatprep.subr.bf16.mxu0 %v308
  %403 = vmatpush1.bf16.msra.mxu0 %v307
  %404 = vmatprep.subr.bf16.mxu0 %v312
  %405 = vmatpush1.bf16.msra.mxu0 %v311
  %406 = vmatprep.subr.bf16.mxu0 %v316
  %407 = vmatpush1.bf16.msra.mxu0 %v315
  %408 = vmatprep.subr.bf16.mxu0 %v320
  %409 = vmatpush1.bf16.msra.mxu0 %v319
  %410 = vmatprep.subr.bf16.mxu0 0
  %411 = vmatpush1.bf16.msra.mxu0 0
  %412 = vmatprep.subr.bf16.mxu0 0
  %413 = vmatpush1.bf16.msra.mxu0 0
  %414 = vmatprep.subr.bf16.mxu0 0
  %415 = vmatpush1.bf16.msra.mxu0 0
  %416 = vmatprep.subr.bf16.mxu0 0
  %417 = vmatpush1.bf16.msra.mxu0 0
  %418 = vmatprep.subr.bf16.mxu0 0
  %419 = vmatpush1.bf16.msra.mxu0 0
  %420 = vmatprep.subr.bf16.mxu0 0
  %421 = vmatpush1.bf16.msra.mxu0 0
  %422 = vmatprep.subr.bf16.mxu0 0
  %423 = vmatpush1.bf16.msra.mxu0 0
  %424 = vmatprep.subr.bf16.mxu0 0
  %425 = vmatpush1.bf16.msra.mxu0 0
  %426 = vmatprep.mubr.bf16.mxu0 0
  %427 = vmatmul.mubr.bf16.gmra.mrb[0].mxu0 %v192
  %v428 = vpop.f32.mrb[0].mxu0
  %v429 = vadd.f32 0.0, %v428
  %v430 = vpop.f32.mrb[0].mxu0
  %v431 = vadd.f32 0.0, %v430
  %v432 = vpop.f32.mrb[0].mxu0
  %v433 = vpop.f32.mrb[0].mxu0
  %434 = vdwg.mxu0
  %v436 = vlaneseq
  %v437 = vshrl.u32 %v436, 7
  %v438 = vsub.s32 0, %v437
  %v439 = vrot.slane %v156, %v438
  %v440 = vlaneseq
  %v441 = vshrl.u32 %v440, 7
  %v442 = vsub.s32 1, %v441
  %v443 = vrot.slane %v156, %v442
  %v444 = vlaneseq
  %v445 = vshrl.u32 %v444, 7
  %v446 = vsub.s32 2, %v445
  %v447 = vrot.slane %v156, %v446
  %v448 = vlaneseq
  %v449 = vshrl.u32 %v448, 7
  %v450 = vsub.s32 3, %v449
  %v451 = vrot.slane %v156, %v450
  %v456 = vsub.f32 %v388, %v439
  %v457 = vsub.f32 %v390, %v443
  %v458 = vsub.f32 %v429, %v447
  %v459 = vsub.f32 %v431, %v451
  %v460 = vmax.f32 %v456, %v457
  %v461 = vmax.f32 %v460, %v458
  %v462 = vmax.f32 %v461, %v459
  %v463 = vld [vmem:[%s5] sm:$0x1]
  %v464 = vmul.f32 %v147, %v463
  %v465 = vadd.f32 %v464, %v462
  %s466 = scalar_lea.vmem %s3, 256
  %v467 = vld [vmem:[%s466] sm:$0xff]
  %v468 = vld [vmem:[%s466 + $0x8] sm:$0xff]
  %v469 = vld [vmem:[%s466 + $0x10] sm:$0xff]
  %v470 = vld [vmem:[%s466 + $0x18] sm:$0xff]
  %v471 = vld [vmem:[%s466 + $0x20] sm:$0xff]
  %v472 = vld [vmem:[%s466 + $0x28] sm:$0xff]
  %v473 = vld [vmem:[%s466 + $0x30] sm:$0xff]
  %v474 = vld [vmem:[%s466 + $0x38] sm:$0xff]
  %v475 = vld [vmem:[%s466 + $0x40] sm:$0xff]
  %v476 = vld [vmem:[%s466 + $0x48] sm:$0xff]
  %v477 = vld [vmem:[%s466 + $0x50] sm:$0xff]
  %v478 = vld [vmem:[%s466 + $0x58] sm:$0xff]
  %v479 = vld [vmem:[%s466 + $0x60] sm:$0xff]
  %v480 = vld [vmem:[%s466 + $0x68] sm:$0xff]
  %v481 = vld [vmem:[%s466 + $0x70] sm:$0xff]
  %v482 = vld [vmem:[%s466 + $0x78] sm:$0xff]
  %v483 = vld [vmem:[%s466 + $0x80] sm:$0xff]
  %v484 = vld [vmem:[%s466 + $0x88] sm:$0xff]
  %v485 = vld [vmem:[%s466 + $0x90] sm:$0xff]
  %v486 = vld [vmem:[%s466 + $0x98] sm:$0xff]
  %v487 = vld [vmem:[%s466 + $0xa0] sm:$0xff]
  %v488 = vld [vmem:[%s466 + $0xa8] sm:$0xff]
  %v489 = vld [vmem:[%s466 + $0xb0] sm:$0xff]
  %v490 = vld [vmem:[%s466 + $0xb8] sm:$0xff]
  %v491 = vld [vmem:[%s466 + $0xc0] sm:$0xff]
  %v492 = vld [vmem:[%s466 + $0xc8] sm:$0xff]
  %v493 = vld [vmem:[%s466 + $0xd0] sm:$0xff]
  %v494 = vld [vmem:[%s466 + $0xd8] sm:$0xff]
  %v495 = vld [vmem:[%s466 + $0xe0] sm:$0xff]
  %v496 = vld [vmem:[%s466 + $0xe8] sm:$0xff]
  %v497 = vld [vmem:[%s466 + $0xf0] sm:$0xff]
  %v498 = vld [vmem:[%s466 + $0xf8] sm:$0xff]
  %v499 = vpack.c.bf16 %v465, %v465
  %v532 = vunpack.c.l.b16 %v467
  %v533 = vunpack.c.h.b16 %v467
  %v534 = vunpack.c.l.b16 %v468
  %v535 = vunpack.c.h.b16 %v468
  %v536 = vunpack.c.l.b16 %v469
  %v537 = vunpack.c.h.b16 %v469
  %v538 = vunpack.c.l.b16 %v470
  %v539 = vunpack.c.h.b16 %v470
  %v540 = vunpack.c.l.b16 %v471
  %v541 = vunpack.c.h.b16 %v471
  %v542 = vunpack.c.l.b16 %v472
  %v543 = vunpack.c.h.b16 %v472
  %v544 = vunpack.c.l.b16 %v473
  %v545 = vunpack.c.h.b16 %v473
  %v546 = vunpack.c.l.b16 %v474
  %v547 = vunpack.c.h.b16 %v474
  %v548 = vunpack.c.l.b16 %v475
  %v549 = vunpack.c.h.b16 %v475
  %v550 = vunpack.c.l.b16 %v476
  %v551 = vunpack.c.h.b16 %v476
  %v552 = vunpack.c.l.b16 %v477
  %v553 = vunpack.c.h.b16 %v477
  %v554 = vunpack.c.l.b16 %v478
  %v555 = vunpack.c.h.b16 %v478
  %v556 = vunpack.c.l.b16 %v479
  %v557 = vunpack.c.h.b16 %v479
  %v558 = vunpack.c.l.b16 %v480
  %v559 = vunpack.c.h.b16 %v480
  %v560 = vunpack.c.l.b16 %v481
  %v561 = vunpack.c.h.b16 %v481
  %v562 = vunpack.c.l.b16 %v482
  %v563 = vunpack.c.h.b16 %v482
  %v564 = vunpack.c.l.b16 %v483
  %v565 = vunpack.c.h.b16 %v483
  %v566 = vunpack.c.l.b16 %v484
  %v567 = vunpack.c.h.b16 %v484
  %v568 = vunpack.c.l.b16 %v485
  %v569 = vunpack.c.h.b16 %v485
  %v570 = vunpack.c.l.b16 %v486
  %v571 = vunpack.c.h.b16 %v486
  %v572 = vunpack.c.l.b16 %v487
  %v573 = vunpack.c.h.b16 %v487
  %v574 = vunpack.c.l.b16 %v488
  %v575 = vunpack.c.h.b16 %v488
  %v576 = vunpack.c.l.b16 %v489
  %v577 = vunpack.c.h.b16 %v489
  %v578 = vunpack.c.l.b16 %v490
  %v579 = vunpack.c.h.b16 %v490
  %v580 = vunpack.c.l.b16 %v491
  %v581 = vunpack.c.h.b16 %v491
  %v582 = vunpack.c.l.b16 %v492
  %v583 = vunpack.c.h.b16 %v492
  %v584 = vunpack.c.l.b16 %v493
  %v585 = vunpack.c.h.b16 %v493
  %v586 = vunpack.c.l.b16 %v494
  %v587 = vunpack.c.h.b16 %v494
  %v588 = vunpack.c.l.b16 %v495
  %v589 = vunpack.c.h.b16 %v495
  %v590 = vunpack.c.l.b16 %v496
  %v591 = vunpack.c.h.b16 %v496
  %v592 = vunpack.c.l.b16 %v497
  %v593 = vunpack.c.h.b16 %v497
  %v594 = vunpack.c.l.b16 %v498
  %v595 = vunpack.c.h.b16 %v498
  %v596 = vpack.c.b16 %v536, %v532
  %v597 = vpack.c.b16 %v537, %v533
  %v598 = vpack.c.b16 %v538, %v534
  %v599 = vpack.c.b16 %v539, %v535
  %v600 = vpack.c.b16 %v544, %v540
  %v601 = vpack.c.b16 %v545, %v541
  %v602 = vpack.c.b16 %v546, %v542
  %v603 = vpack.c.b16 %v547, %v543
  %v604 = vpack.c.b16 %v552, %v548
  %v605 = vpack.c.b16 %v553, %v549
  %v606 = vpack.c.b16 %v554, %v550
  %v607 = vpack.c.b16 %v555, %v551
  %v608 = vpack.c.b16 %v560, %v556
  %v609 = vpack.c.b16 %v561, %v557
  %v610 = vpack.c.b16 %v562, %v558
  %v611 = vpack.c.b16 %v563, %v559
  %v612 = vpack.c.b16 %v568, %v564
  %v613 = vpack.c.b16 %v569, %v565
  %v614 = vpack.c.b16 %v570, %v566
  %v615 = vpack.c.b16 %v571, %v567
  %v616 = vpack.c.b16 %v576, %v572
  %v617 = vpack.c.b16 %v577, %v573
  %v618 = vpack.c.b16 %v578, %v574
  %v619 = vpack.c.b16 %v579, %v575
  %v620 = vpack.c.b16 %v584, %v580
  %v621 = vpack.c.b16 %v585, %v581
  %v622 = vpack.c.b16 %v586, %v582
  %v623 = vpack.c.b16 %v587, %v583
  %v624 = vpack.c.b16 %v592, %v588
  %v625 = vpack.c.b16 %v593, %v589
  %v626 = vpack.c.b16 %v594, %v590
  %v627 = vpack.c.b16 %v595, %v591
  %660 = vmatprep.subr.bf16.mxu0 %v597
  %661 = vmatpush1.bf16.msra.mxu0 %v596
  %662 = vmatprep.subr.bf16.mxu0 %v601
  %663 = vmatpush1.bf16.msra.mxu0 %v600
  %664 = vmatprep.subr.bf16.mxu0 %v605
  %665 = vmatpush1.bf16.msra.mxu0 %v604
  %666 = vmatprep.subr.bf16.mxu0 %v609
  %667 = vmatpush1.bf16.msra.mxu0 %v608
  %668 = vmatprep.subr.bf16.mxu0 %v613
  %669 = vmatpush1.bf16.msra.mxu0 %v612
  %670 = vmatprep.subr.bf16.mxu0 %v617
  %671 = vmatpush1.bf16.msra.mxu0 %v616
  %672 = vmatprep.subr.bf16.mxu0 %v621
  %673 = vmatpush1.bf16.msra.mxu0 %v620
  %674 = vmatprep.subr.bf16.mxu0 %v625
  %675 = vmatpush1.bf16.msra.mxu0 %v624
  %676 = vmatprep.subr.bf16.mxu0 0
  %677 = vmatpush1.bf16.msra.mxu0 0
  %678 = vmatprep.subr.bf16.mxu0 0
  %679 = vmatpush1.bf16.msra.mxu0 0
  %680 = vmatprep.subr.bf16.mxu0 0
  %681 = vmatpush1.bf16.msra.mxu0 0
  %682 = vmatprep.subr.bf16.mxu0 0
  %683 = vmatpush1.bf16.msra.mxu0 0
  %684 = vmatprep.subr.bf16.mxu0 0
  %685 = vmatpush1.bf16.msra.mxu0 0
  %686 = vmatprep.subr.bf16.mxu0 0
  %687 = vmatpush1.bf16.msra.mxu0 0
  %688 = vmatprep.subr.bf16.mxu0 0
  %689 = vmatpush1.bf16.msra.mxu0 0
  %690 = vmatprep.subr.bf16.mxu0 0
  %691 = vmatpush1.bf16.msra.mxu0 0
  %692 = vmatprep.mubr.bf16.mxu0 0
  %693 = vmatmul.mubr.bf16.gmra.mrb[0].mxu0 %v499
  %v694 = vpop.f32.mrb[0].mxu0
  %v695 = vadd.f32 0.0, %v694
  %v696 = vpop.f32.mrb[0].mxu0
  %v697 = vadd.f32 0.0, %v696
  %v698 = vpop.f32.mrb[0].mxu0
  %v699 = vpop.f32.mrb[0].mxu0
  %700 = vdwg.mxu0
  %701 = vmatprep.subr.bf16.mxu0 %v599
  %702 = vmatpush1.bf16.msra.mxu0 %v598
  %703 = vmatprep.subr.bf16.mxu0 %v603
  %704 = vmatpush1.bf16.msra.mxu0 %v602
  %705 = vmatprep.subr.bf16.mxu0 %v607
  %706 = vmatpush1.bf16.msra.mxu0 %v606
  %707 = vmatprep.subr.bf16.mxu0 %v611
  %708 = vmatpush1.bf16.msra.mxu0 %v610
  %709 = vmatprep.subr.bf16.mxu0 %v615
  %710 = vmatpush1.bf16.msra.mxu0 %v614
  %711 = vmatprep.subr.bf16.mxu0 %v619
  %712 = vmatpush1.bf16.msra.mxu0 %v618
  %713 = vmatprep.subr.bf16.mxu0 %v623
  %714 = vmatpush1.bf16.msra.mxu0 %v622
  %715 = vmatprep.subr.bf16.mxu0 %v627
  %716 = vmatpush1.bf16.msra.mxu0 %v626
  %717 = vmatprep.subr.bf16.mxu0 0
  %718 = vmatpush1.bf16.msra.mxu0 0
  %719 = vmatprep.subr.bf16.mxu0 0
  %720 = vmatpush1.bf16.msra.mxu0 0
  %721 = vmatprep.subr.bf16.mxu0 0
  %722 = vmatpush1.bf16.msra.mxu0 0
  %723 = vmatprep.subr.bf16.mxu0 0
  %724 = vmatpush1.bf16.msra.mxu0 0
  %725 = vmatprep.subr.bf16.mxu0 0
  %726 = vmatpush1.bf16.msra.mxu0 0
  %727 = vmatprep.subr.bf16.mxu0 0
  %728 = vmatpush1.bf16.msra.mxu0 0
  %729 = vmatprep.subr.bf16.mxu0 0
  %730 = vmatpush1.bf16.msra.mxu0 0
  %731 = vmatprep.subr.bf16.mxu0 0
  %732 = vmatpush1.bf16.msra.mxu0 0
  %733 = vmatprep.mubr.bf16.mxu0 0
  %734 = vmatmul.mubr.bf16.gmra.mrb[0].mxu0 %v499
  %v735 = vpop.f32.mrb[0].mxu0
  %v736 = vadd.f32 0.0, %v735
  %v737 = vpop.f32.mrb[0].mxu0
  %v738 = vadd.f32 0.0, %v737
  %v739 = vpop.f32.mrb[0].mxu0
  %v740 = vpop.f32.mrb[0].mxu0
  %741 = vdwg.mxu0
  %v743 = vlaneseq
  %v744 = vshrl.u32 %v743, 7
  %v745 = vsub.s32 0, %v744
  %v746 = vrot.slane %v157, %v745
  %v747 = vlaneseq
  %v748 = vshrl.u32 %v747, 7
  %v749 = vsub.s32 1, %v748
  %v750 = vrot.slane %v157, %v749
  %v751 = vlaneseq
  %v752 = vshrl.u32 %v751, 7
  %v753 = vsub.s32 2, %v752
  %v754 = vrot.slane %v157, %v753
  %v755 = vlaneseq
  %v756 = vshrl.u32 %v755, 7
  %v757 = vsub.s32 3, %v756
  %v758 = vrot.slane %v157, %v757
  %v763 = vsub.f32 %v695, %v746
  %v764 = vsub.f32 %v697, %v750
  %v765 = vsub.f32 %v736, %v754
  %v766 = vsub.f32 %v738, %v758
  %v767 = vmax.f32 %v763, %v764
  %v768 = vmax.f32 %v767, %v765
  %v769 = vmax.f32 %v768, %v766
  %s770 = scalar_lea.vmem %s5, 1
  %v771 = vld [vmem:[%s770] sm:$0x1]
  %v772 = vmul.f32 %v465, %v771
  %v773 = vadd.f32 %v772, %v769
  %s774 = scalar_lea.vmem %s3, 512
  %v775 = vld [vmem:[%s774] sm:$0xff]
  %v776 = vld [vmem:[%s774 + $0x8] sm:$0xff]
  %v777 = vld [vmem:[%s774 + $0x10] sm:$0xff]
  %v778 = vld [vmem:[%s774 + $0x18] sm:$0xff]
  %v779 = vld [vmem:[%s774 + $0x20] sm:$0xff]
  %v780 = vld [vmem:[%s774 + $0x28] sm:$0xff]
  %v781 = vld [vmem:[%s774 + $0x30] sm:$0xff]
  %v782 = vld [vmem:[%s774 + $0x38] sm:$0xff]
  %v783 = vld [vmem:[%s774 + $0x40] sm:$0xff]
  %v784 = vld [vmem:[%s774 + $0x48] sm:$0xff]
  %v785 = vld [vmem:[%s774 + $0x50] sm:$0xff]
  %v786 = vld [vmem:[%s774 + $0x58] sm:$0xff]
  %v787 = vld [vmem:[%s774 + $0x60] sm:$0xff]
  %v788 = vld [vmem:[%s774 + $0x68] sm:$0xff]
  %v789 = vld [vmem:[%s774 + $0x70] sm:$0xff]
  %v790 = vld [vmem:[%s774 + $0x78] sm:$0xff]
  %v791 = vld [vmem:[%s774 + $0x80] sm:$0xff]
  %v792 = vld [vmem:[%s774 + $0x88] sm:$0xff]
  %v793 = vld [vmem:[%s774 + $0x90] sm:$0xff]
  %v794 = vld [vmem:[%s774 + $0x98] sm:$0xff]
  %v795 = vld [vmem:[%s774 + $0xa0] sm:$0xff]
  %v796 = vld [vmem:[%s774 + $0xa8] sm:$0xff]
  %v797 = vld [vmem:[%s774 + $0xb0] sm:$0xff]
  %v798 = vld [vmem:[%s774 + $0xb8] sm:$0xff]
  %v799 = vld [vmem:[%s774 + $0xc0] sm:$0xff]
  %v800 = vld [vmem:[%s774 + $0xc8] sm:$0xff]
  %v801 = vld [vmem:[%s774 + $0xd0] sm:$0xff]
  %v802 = vld [vmem:[%s774 + $0xd8] sm:$0xff]
  %v803 = vld [vmem:[%s774 + $0xe0] sm:$0xff]
  %v804 = vld [vmem:[%s774 + $0xe8] sm:$0xff]
  %v805 = vld [vmem:[%s774 + $0xf0] sm:$0xff]
  %v806 = vld [vmem:[%s774 + $0xf8] sm:$0xff]
  %v807 = vpack.c.bf16 %v773, %v773
  %v840 = vunpack.c.l.b16 %v775
  %v841 = vunpack.c.h.b16 %v775
  %v842 = vunpack.c.l.b16 %v776
  %v843 = vunpack.c.h.b16 %v776
  %v844 = vunpack.c.l.b16 %v777
  %v845 = vunpack.c.h.b16 %v777
  %v846 = vunpack.c.l.b16 %v778
  %v847 = vunpack.c.h.b16 %v778
  %v848 = vunpack.c.l.b16 %v779
  %v849 = vunpack.c.h.b16 %v779
  %v850 = vunpack.c.l.b16 %v780
  %v851 = vunpack.c.h.b16 %v780
  %v852 = vunpack.c.l.b16 %v781
  %v853 = vunpack.c.h.b16 %v781
  %v854 = vunpack.c.l.b16 %v782
  %v855 = vunpack.c.h.b16 %v782
  %v856 = vunpack.c.l.b16 %v783
  %v857 = vunpack.c.h.b16 %v783
  %v858 = vunpack.c.l.b16 %v784
  %v859 = vunpack.c.h.b16 %v784
  %v860 = vunpack.c.l.b16 %v785
  %v861 = vunpack.c.h.b16 %v785
  %v862 = vunpack.c.l.b16 %v786
  %v863 = vunpack.c.h.b16 %v786
  %v864 = vunpack.c.l.b16 %v787
  %v865 = vunpack.c.h.b16 %v787
  %v866 = vunpack.c.l.b16 %v788
  %v867 = vunpack.c.h.b16 %v788
  %v868 = vunpack.c.l.b16 %v789
  %v869 = vunpack.c.h.b16 %v789
  %v870 = vunpack.c.l.b16 %v790
  %v871 = vunpack.c.h.b16 %v790
  %v872 = vunpack.c.l.b16 %v791
  %v873 = vunpack.c.h.b16 %v791
  %v874 = vunpack.c.l.b16 %v792
  %v875 = vunpack.c.h.b16 %v792
  %v876 = vunpack.c.l.b16 %v793
  %v877 = vunpack.c.h.b16 %v793
  %v878 = vunpack.c.l.b16 %v794
  %v879 = vunpack.c.h.b16 %v794
  %v880 = vunpack.c.l.b16 %v795
  %v881 = vunpack.c.h.b16 %v795
  %v882 = vunpack.c.l.b16 %v796
  %v883 = vunpack.c.h.b16 %v796
  %v884 = vunpack.c.l.b16 %v797
  %v885 = vunpack.c.h.b16 %v797
  %v886 = vunpack.c.l.b16 %v798
  %v887 = vunpack.c.h.b16 %v798
  %v888 = vunpack.c.l.b16 %v799
  %v889 = vunpack.c.h.b16 %v799
  %v890 = vunpack.c.l.b16 %v800
  %v891 = vunpack.c.h.b16 %v800
  %v892 = vunpack.c.l.b16 %v801
  %v893 = vunpack.c.h.b16 %v801
  %v894 = vunpack.c.l.b16 %v802
  %v895 = vunpack.c.h.b16 %v802
  %v896 = vunpack.c.l.b16 %v803
  %v897 = vunpack.c.h.b16 %v803
  %v898 = vunpack.c.l.b16 %v804
  %v899 = vunpack.c.h.b16 %v804
  %v900 = vunpack.c.l.b16 %v805
  %v901 = vunpack.c.h.b16 %v805
  %v902 = vunpack.c.l.b16 %v806
  %v903 = vunpack.c.h.b16 %v806
  %v904 = vpack.c.b16 %v844, %v840
  %v905 = vpack.c.b16 %v845, %v841
  %v906 = vpack.c.b16 %v846, %v842
  %v907 = vpack.c.b16 %v847, %v843
  %v908 = vpack.c.b16 %v852, %v848
  %v909 = vpack.c.b16 %v853, %v849
  %v910 = vpack.c.b16 %v854, %v850
  %v911 = vpack.c.b16 %v855, %v851
  %v912 = vpack.c.b16 %v860, %v856
  %v913 = vpack.c.b16 %v861, %v857
  %v914 = vpack.c.b16 %v862, %v858
  %v915 = vpack.c.b16 %v863, %v859
  %v916 = vpack.c.b16 %v868, %v864
  %v917 = vpack.c.b16 %v869, %v865
  %v918 = vpack.c.b16 %v870, %v866
  %v919 = vpack.c.b16 %v871, %v867
  %v920 = vpack.c.b16 %v876, %v872
  %v921 = vpack.c.b16 %v877, %v873
  %v922 = vpack.c.b16 %v878, %v874
  %v923 = vpack.c.b16 %v879, %v875
  %v924 = vpack.c.b16 %v884, %v880
  %v925 = vpack.c.b16 %v885, %v881
  %v926 = vpack.c.b16 %v886, %v882
  %v927 = vpack.c.b16 %v887, %v883
  %v928 = vpack.c.b16 %v892, %v888
  %v929 = vpack.c.b16 %v893, %v889
  %v930 = vpack.c.b16 %v894, %v890
  %v931 = vpack.c.b16 %v895, %v891
  %v932 = vpack.c.b16 %v900, %v896
  %v933 = vpack.c.b16 %v901, %v897
  %v934 = vpack.c.b16 %v902, %v898
  %v935 = vpack.c.b16 %v903, %v899
  %968 = vmatprep.subr.bf16.mxu0 %v905
  %969 = vmatpush1.bf16.msra.mxu0 %v904
  %970 = vmatprep.subr.bf16.mxu0 %v909
  %971 = vmatpush1.bf16.msra.mxu0 %v908
  %972 = vmatprep.subr.bf16.mxu0 %v913
  %973 = vmatpush1.bf16.msra.mxu0 %v912
  %974 = vmatprep.subr.bf16.mxu0 %v917
  %975 = vmatpush1.bf16.msra.mxu0 %v916
  %976 = vmatprep.subr.bf16.mxu0 %v921
  %977 = vmatpush1.bf16.msra.mxu0 %v920
  %978 = vmatprep.subr.bf16.mxu0 %v925
  %979 = vmatpush1.bf16.msra.mxu0 %v924
  %980 = vmatprep.subr.bf16.mxu0 %v929
  %981 = vmatpush1.bf16.msra.mxu0 %v928
  %982 = vmatprep.subr.bf16.mxu0 %v933
  %983 = vmatpush1.bf16.msra.mxu0 %v932
  %984 = vmatprep.subr.bf16.mxu0 0
  %985 = vmatpush1.bf16.msra.mxu0 0
  %986 = vmatprep.subr.bf16.mxu0 0
  %987 = vmatpush1.bf16.msra.mxu0 0
  %988 = vmatprep.subr.bf16.mxu0 0
  %989 = vmatpush1.bf16.msra.mxu0 0
  %990 = vmatprep.subr.bf16.mxu0 0
  %991 = vmatpush1.bf16.msra.mxu0 0
  %992 = vmatprep.subr.bf16.mxu0 0
  %993 = vmatpush1.bf16.msra.mxu0 0
  %994 = vmatprep.subr.bf16.mxu0 0
  %995 = vmatpush1.bf16.msra.mxu0 0
  %996 = vmatprep.subr.bf16.mxu0 0
  %997 = vmatpush1.bf16.msra.mxu0 0
  %998 = vmatprep.subr.bf16.mxu0 0
  %999 = vmatpush1.bf16.msra.mxu0 0
  %1000 = vmatprep.mubr.bf16.mxu0 0
  %1001 = vmatmul.mubr.bf16.gmra.mrb[0].mxu0 %v807
  %v1002 = vpop.f32.mrb[0].mxu0
  %v1003 = vadd.f32 0.0, %v1002
  %v1004 = vpop.f32.mrb[0].mxu0
  %v1005 = vadd.f32 0.0, %v1004
  %v1006 = vpop.f32.mrb[0].mxu0
  %v1007 = vpop.f32.mrb[0].mxu0
  %1008 = vdwg.mxu0
  %1009 = vmatprep.subr.bf16.mxu0 %v907
  %1010 = vmatpush1.bf16.msra.mxu0 %v906
  %1011 = vmatprep.subr.bf16.mxu0 %v911
  %1012 = vmatpush1.bf16.msra.mxu0 %v910
  %1013 = vmatprep.subr.bf16.mxu0 %v915
  %1014 = vmatpush1.bf16.msra.mxu0 %v914
  %1015 = vmatprep.subr.bf16.mxu0 %v919
  %1016 = vmatpush1.bf16.msra.mxu0 %v918
  %1017 = vmatprep.subr.bf16.mxu0 %v923
  %1018 = vmatpush1.bf16.msra.mxu0 %v922
  %1019 = vmatprep.subr.bf16.mxu0 %v927
  %1020 = vmatpush1.bf16.msra.mxu0 %v926
  %1021 = vmatprep.subr.bf16.mxu0 %v931
  %1022 = vmatpush1.bf16.msra.mxu0 %v930
  %1023 = vmatprep.subr.bf16.mxu0 %v935
  %1024 = vmatpush1.bf16.msra.mxu0 %v934
  %1025 = vmatprep.subr.bf16.mxu0 0
  %1026 = vmatpush1.bf16.msra.mxu0 0
  %1027 = vmatprep.subr.bf16.mxu0 0
  %1028 = vmatpush1.bf16.msra.mxu0 0
  %1029 = vmatprep.subr.bf16.mxu0 0
  %1030 = vmatpush1.bf16.msra.mxu0 0
  %1031 = vmatprep.subr.bf16.mxu0 0
  %1032 = vmatpush1.bf16.msra.mxu0 0
  %1033 = vmatprep.subr.bf16.mxu0 0
  %1034 = vmatpush1.bf16.msra.mxu0 0
  %1035 = vmatprep.subr.bf16.mxu0 0
  %1036 = vmatpush1.bf16.msra.mxu0 0
  %1037 = vmatprep.subr.bf16.mxu0 0
  %1038 = vmatpush1.bf16.msra.mxu0 0
  %1039 = vmatprep.subr.bf16.mxu0 0
  %1040 = vmatpush1.bf16.msra.mxu0 0
  %1041 = vmatprep.mubr.bf16.mxu0 0
  %1042 = vmatmul.mubr.bf16.gmra.mrb[0].mxu0 %v807
  %v1043 = vpop.f32.mrb[0].mxu0
  %v1044 = vadd.f32 0.0, %v1043
  %v1045 = vpop.f32.mrb[0].mxu0
  %v1046 = vadd.f32 0.0, %v1045
  %v1047 = vpop.f32.mrb[0].mxu0
  %v1048 = vpop.f32.mrb[0].mxu0
  %1049 = vdwg.mxu0
  %v1051 = vlaneseq
  %v1052 = vshrl.u32 %v1051, 7
  %v1053 = vsub.s32 0, %v1052
  %v1054 = vrot.slane %v158, %v1053
  %v1055 = vlaneseq
  %v1056 = vshrl.u32 %v1055, 7
  %v1057 = vsub.s32 1, %v1056
  %v1058 = vrot.slane %v158, %v1057
  %v1059 = vlaneseq
  %v1060 = vshrl.u32 %v1059, 7
  %v1061 = vsub.s32 2, %v1060
  %v1062 = vrot.slane %v158, %v1061
  %v1063 = vlaneseq
  %v1064 = vshrl.u32 %v1063, 7
  %v1065 = vsub.s32 3, %v1064
  %v1066 = vrot.slane %v158, %v1065
  %v1071 = vsub.f32 %v1003, %v1054
  %v1072 = vsub.f32 %v1005, %v1058
  %v1073 = vsub.f32 %v1044, %v1062
  %v1074 = vsub.f32 %v1046, %v1066
  %v1075 = vmax.f32 %v1071, %v1072
  %v1076 = vmax.f32 %v1075, %v1073
  %v1077 = vmax.f32 %v1076, %v1074
  %s1078 = scalar_lea.vmem %s5, 2
  %v1079 = vld [vmem:[%s1078] sm:$0x1]
  %v1080 = vmul.f32 %v773, %v1079
  %v1081 = vadd.f32 %v1080, %v1077
  %s1082 = scalar_lea.vmem %s3, 768
  %v1083 = vld [vmem:[%s1082] sm:$0xff]
  %v1084 = vld [vmem:[%s1082 + $0x8] sm:$0xff]
  %v1085 = vld [vmem:[%s1082 + $0x10] sm:$0xff]
  %v1086 = vld [vmem:[%s1082 + $0x18] sm:$0xff]
  %v1087 = vld [vmem:[%s1082 + $0x20] sm:$0xff]
  %v1088 = vld [vmem:[%s1082 + $0x28] sm:$0xff]
  %v1089 = vld [vmem:[%s1082 + $0x30] sm:$0xff]
  %v1090 = vld [vmem:[%s1082 + $0x38] sm:$0xff]
  %v1091 = vld [vmem:[%s1082 + $0x40] sm:$0xff]
  %v1092 = vld [vmem:[%s1082 + $0x48] sm:$0xff]
  %v1093 = vld [vmem:[%s1082 + $0x50] sm:$0xff]
  %v1094 = vld [vmem:[%s1082 + $0x58] sm:$0xff]
  %v1095 = vld [vmem:[%s1082 + $0x60] sm:$0xff]
  %v1096 = vld [vmem:[%s1082 + $0x68] sm:$0xff]
  %v1097 = vld [vmem:[%s1082 + $0x70] sm:$0xff]
  %v1098 = vld [vmem:[%s1082 + $0x78] sm:$0xff]
  %v1099 = vld [vmem:[%s1082 + $0x80] sm:$0xff]
  %v1100 = vld [vmem:[%s1082 + $0x88] sm:$0xff]
  %v1101 = vld [vmem:[%s1082 + $0x90] sm:$0xff]
  %v1102 = vld [vmem:[%s1082 + $0x98] sm:$0xff]
  %v1103 = vld [vmem:[%s1082 + $0xa0] sm:$0xff]
  %v1104 = vld [vmem:[%s1082 + $0xa8] sm:$0xff]
  %v1105 = vld [vmem:[%s1082 + $0xb0] sm:$0xff]
  %v1106 = vld [vmem:[%s1082 + $0xb8] sm:$0xff]
  %v1107 = vld [vmem:[%s1082 + $0xc0] sm:$0xff]
  %v1108 = vld [vmem:[%s1082 + $0xc8] sm:$0xff]
  %v1109 = vld [vmem:[%s1082 + $0xd0] sm:$0xff]
  %v1110 = vld [vmem:[%s1082 + $0xd8] sm:$0xff]
  %v1111 = vld [vmem:[%s1082 + $0xe0] sm:$0xff]
  %v1112 = vld [vmem:[%s1082 + $0xe8] sm:$0xff]
  %v1113 = vld [vmem:[%s1082 + $0xf0] sm:$0xff]
  %v1114 = vld [vmem:[%s1082 + $0xf8] sm:$0xff]
  %v1115 = vpack.c.bf16 %v1081, %v1081
  %v1148 = vunpack.c.l.b16 %v1083
  %v1149 = vunpack.c.h.b16 %v1083
  %v1150 = vunpack.c.l.b16 %v1084
  %v1151 = vunpack.c.h.b16 %v1084
  %v1152 = vunpack.c.l.b16 %v1085
  %v1153 = vunpack.c.h.b16 %v1085
  %v1154 = vunpack.c.l.b16 %v1086
  %v1155 = vunpack.c.h.b16 %v1086
  %v1156 = vunpack.c.l.b16 %v1087
  %v1157 = vunpack.c.h.b16 %v1087
  %v1158 = vunpack.c.l.b16 %v1088
  %v1159 = vunpack.c.h.b16 %v1088
  %v1160 = vunpack.c.l.b16 %v1089
  %v1161 = vunpack.c.h.b16 %v1089
  %v1162 = vunpack.c.l.b16 %v1090
  %v1163 = vunpack.c.h.b16 %v1090
  %v1164 = vunpack.c.l.b16 %v1091
  %v1165 = vunpack.c.h.b16 %v1091
  %v1166 = vunpack.c.l.b16 %v1092
  %v1167 = vunpack.c.h.b16 %v1092
  %v1168 = vunpack.c.l.b16 %v1093
  %v1169 = vunpack.c.h.b16 %v1093
  %v1170 = vunpack.c.l.b16 %v1094
  %v1171 = vunpack.c.h.b16 %v1094
  %v1172 = vunpack.c.l.b16 %v1095
  %v1173 = vunpack.c.h.b16 %v1095
  %v1174 = vunpack.c.l.b16 %v1096
  %v1175 = vunpack.c.h.b16 %v1096
  %v1176 = vunpack.c.l.b16 %v1097
  %v1177 = vunpack.c.h.b16 %v1097
  %v1178 = vunpack.c.l.b16 %v1098
  %v1179 = vunpack.c.h.b16 %v1098
  %v1180 = vunpack.c.l.b16 %v1099
  %v1181 = vunpack.c.h.b16 %v1099
  %v1182 = vunpack.c.l.b16 %v1100
  %v1183 = vunpack.c.h.b16 %v1100
  %v1184 = vunpack.c.l.b16 %v1101
  %v1185 = vunpack.c.h.b16 %v1101
  %v1186 = vunpack.c.l.b16 %v1102
  %v1187 = vunpack.c.h.b16 %v1102
  %v1188 = vunpack.c.l.b16 %v1103
  %v1189 = vunpack.c.h.b16 %v1103
  %v1190 = vunpack.c.l.b16 %v1104
  %v1191 = vunpack.c.h.b16 %v1104
  %v1192 = vunpack.c.l.b16 %v1105
  %v1193 = vunpack.c.h.b16 %v1105
  %v1194 = vunpack.c.l.b16 %v1106
  %v1195 = vunpack.c.h.b16 %v1106
  %v1196 = vunpack.c.l.b16 %v1107
  %v1197 = vunpack.c.h.b16 %v1107
  %v1198 = vunpack.c.l.b16 %v1108
  %v1199 = vunpack.c.h.b16 %v1108
  %v1200 = vunpack.c.l.b16 %v1109
  %v1201 = vunpack.c.h.b16 %v1109
  %v1202 = vunpack.c.l.b16 %v1110
  %v1203 = vunpack.c.h.b16 %v1110
  %v1204 = vunpack.c.l.b16 %v1111
  %v1205 = vunpack.c.h.b16 %v1111
  %v1206 = vunpack.c.l.b16 %v1112
  %v1207 = vunpack.c.h.b16 %v1112
  %v1208 = vunpack.c.l.b16 %v1113
  %v1209 = vunpack.c.h.b16 %v1113
  %v1210 = vunpack.c.l.b16 %v1114
  %v1211 = vunpack.c.h.b16 %v1114
  %v1212 = vpack.c.b16 %v1152, %v1148
  %v1213 = vpack.c.b16 %v1153, %v1149
  %v1214 = vpack.c.b16 %v1154, %v1150
  %v1215 = vpack.c.b16 %v1155, %v1151
  %v1216 = vpack.c.b16 %v1160, %v1156
  %v1217 = vpack.c.b16 %v1161, %v1157
  %v1218 = vpack.c.b16 %v1162, %v1158
  %v1219 = vpack.c.b16 %v1163, %v1159
  %v1220 = vpack.c.b16 %v1168, %v1164
  %v1221 = vpack.c.b16 %v1169, %v1165
  %v1222 = vpack.c.b16 %v1170, %v1166
  %v1223 = vpack.c.b16 %v1171, %v1167
  %v1224 = vpack.c.b16 %v1176, %v1172
  %v1225 = vpack.c.b16 %v1177, %v1173
  %v1226 = vpack.c.b16 %v1178, %v1174
  %v1227 = vpack.c.b16 %v1179, %v1175
  %v1228 = vpack.c.b16 %v1184, %v1180
  %v1229 = vpack.c.b16 %v1185, %v1181
  %v1230 = vpack.c.b16 %v1186, %v1182
  %v1231 = vpack.c.b16 %v1187, %v1183
  %v1232 = vpack.c.b16 %v1192, %v1188
  %v1233 = vpack.c.b16 %v1193, %v1189
  %v1234 = vpack.c.b16 %v1194, %v1190
  %v1235 = vpack.c.b16 %v1195, %v1191
  %v1236 = vpack.c.b16 %v1200, %v1196
  %v1237 = vpack.c.b16 %v1201, %v1197
  %v1238 = vpack.c.b16 %v1202, %v1198
  %v1239 = vpack.c.b16 %v1203, %v1199
  %v1240 = vpack.c.b16 %v1208, %v1204
  %v1241 = vpack.c.b16 %v1209, %v1205
  %v1242 = vpack.c.b16 %v1210, %v1206
  %v1243 = vpack.c.b16 %v1211, %v1207
  %1276 = vmatprep.subr.bf16.mxu0 %v1213
  %1277 = vmatpush1.bf16.msra.mxu0 %v1212
  %1278 = vmatprep.subr.bf16.mxu0 %v1217
  %1279 = vmatpush1.bf16.msra.mxu0 %v1216
  %1280 = vmatprep.subr.bf16.mxu0 %v1221
  %1281 = vmatpush1.bf16.msra.mxu0 %v1220
  %1282 = vmatprep.subr.bf16.mxu0 %v1225
  %1283 = vmatpush1.bf16.msra.mxu0 %v1224
  %1284 = vmatprep.subr.bf16.mxu0 %v1229
  %1285 = vmatpush1.bf16.msra.mxu0 %v1228
  %1286 = vmatprep.subr.bf16.mxu0 %v1233
  %1287 = vmatpush1.bf16.msra.mxu0 %v1232
  %1288 = vmatprep.subr.bf16.mxu0 %v1237
  %1289 = vmatpush1.bf16.msra.mxu0 %v1236
  %1290 = vmatprep.subr.bf16.mxu0 %v1241
  %1291 = vmatpush1.bf16.msra.mxu0 %v1240
  %1292 = vmatprep.subr.bf16.mxu0 0
  %1293 = vmatpush1.bf16.msra.mxu0 0
  %1294 = vmatprep.subr.bf16.mxu0 0
  %1295 = vmatpush1.bf16.msra.mxu0 0
  %1296 = vmatprep.subr.bf16.mxu0 0
  %1297 = vmatpush1.bf16.msra.mxu0 0
  %1298 = vmatprep.subr.bf16.mxu0 0
  %1299 = vmatpush1.bf16.msra.mxu0 0
  %1300 = vmatprep.subr.bf16.mxu0 0
  %1301 = vmatpush1.bf16.msra.mxu0 0
  %1302 = vmatprep.subr.bf16.mxu0 0
  %1303 = vmatpush1.bf16.msra.mxu0 0
  %1304 = vmatprep.subr.bf16.mxu0 0
  %1305 = vmatpush1.bf16.msra.mxu0 0
  %1306 = vmatprep.subr.bf16.mxu0 0
  %1307 = vmatpush1.bf16.msra.mxu0 0
  %1308 = vmatprep.mubr.bf16.mxu0 0
  %1309 = vmatmul.mubr.bf16.gmra.mrb[0].mxu0 %v1115
  %v1310 = vpop.f32.mrb[0].mxu0
  %v1311 = vadd.f32 0.0, %v1310
  %v1312 = vpop.f32.mrb[0].mxu0
  %v1313 = vadd.f32 0.0, %v1312
  %v1314 = vpop.f32.mrb[0].mxu0
  %v1315 = vpop.f32.mrb[0].mxu0
  %1316 = vdwg.mxu0
  %1317 = vmatprep.subr.bf16.mxu0 %v1215
  %1318 = vmatpush1.bf16.msra.mxu0 %v1214
  %1319 = vmatprep.subr.bf16.mxu0 %v1219
  %1320 = vmatpush1.bf16.msra.mxu0 %v1218
  %1321 = vmatprep.subr.bf16.mxu0 %v1223
  %1322 = vmatpush1.bf16.msra.mxu0 %v1222
  %1323 = vmatprep.subr.bf16.mxu0 %v1227
  %1324 = vmatpush1.bf16.msra.mxu0 %v1226
  %1325 = vmatprep.subr.bf16.mxu0 %v1231
  %1326 = vmatpush1.bf16.msra.mxu0 %v1230
  %1327 = vmatprep.subr.bf16.mxu0 %v1235
  %1328 = vmatpush1.bf16.msra.mxu0 %v1234
  %1329 = vmatprep.subr.bf16.mxu0 %v1239
  %1330 = vmatpush1.bf16.msra.mxu0 %v1238
  %1331 = vmatprep.subr.bf16.mxu0 %v1243
  %1332 = vmatpush1.bf16.msra.mxu0 %v1242
  %1333 = vmatprep.subr.bf16.mxu0 0
  %1334 = vmatpush1.bf16.msra.mxu0 0
  %1335 = vmatprep.subr.bf16.mxu0 0
  %1336 = vmatpush1.bf16.msra.mxu0 0
  %1337 = vmatprep.subr.bf16.mxu0 0
  %1338 = vmatpush1.bf16.msra.mxu0 0
  %1339 = vmatprep.subr.bf16.mxu0 0
  %1340 = vmatpush1.bf16.msra.mxu0 0
  %1341 = vmatprep.subr.bf16.mxu0 0
  %1342 = vmatpush1.bf16.msra.mxu0 0
  %1343 = vmatprep.subr.bf16.mxu0 0
  %1344 = vmatpush1.bf16.msra.mxu0 0
  %1345 = vmatprep.subr.bf16.mxu0 0
  %1346 = vmatpush1.bf16.msra.mxu0 0
  %1347 = vmatprep.subr.bf16.mxu0 0
  %1348 = vmatpush1.bf16.msra.mxu0 0
  %1349 = vmatprep.mubr.bf16.mxu0 0
  %1350 = vmatmul.mubr.bf16.gmra.mrb[0].mxu0 %v1115
  %v1351 = vpop.f32.mrb[0].mxu0
  %v1352 = vadd.f32 0.0, %v1351
  %v1353 = vpop.f32.mrb[0].mxu0
  %v1354 = vadd.f32 0.0, %v1353
  %v1355 = vpop.f32.mrb[0].mxu0
  %v1356 = vpop.f32.mrb[0].mxu0
  %1357 = vdwg.mxu0
  %v1359 = vlaneseq
  %v1360 = vshrl.u32 %v1359, 7
  %v1361 = vsub.s32 0, %v1360
  %v1362 = vrot.slane %v159, %v1361
  %v1363 = vlaneseq
  %v1364 = vshrl.u32 %v1363, 7
  %v1365 = vsub.s32 1, %v1364
  %v1366 = vrot.slane %v159, %v1365
  %v1367 = vlaneseq
  %v1368 = vshrl.u32 %v1367, 7
  %v1369 = vsub.s32 2, %v1368
  %v1370 = vrot.slane %v159, %v1369
  %v1371 = vlaneseq
  %v1372 = vshrl.u32 %v1371, 7
  %v1373 = vsub.s32 3, %v1372
  %v1374 = vrot.slane %v159, %v1373
  %v1379 = vsub.f32 %v1311, %v1362
  %v1380 = vsub.f32 %v1313, %v1366
  %v1381 = vsub.f32 %v1352, %v1370
  %v1382 = vsub.f32 %v1354, %v1374
  %v1383 = vmax.f32 %v1379, %v1380
  %v1384 = vmax.f32 %v1383, %v1381
  %v1385 = vmax.f32 %v1384, %v1382
  %s1386 = scalar_lea.vmem %s5, 3
  %v1387 = vld [vmem:[%s1386] sm:$0x1]
  %v1388 = vmul.f32 %v1081, %v1387
  %v1389 = vadd.f32 %v1388, %v1385
  %1390 = vst [vmem:[%s6] sm:$0x1] %v1389
  // Predicated region
  $region26: #{tclt_forward_pallas.1} parent=0 // pred_check
    _
  $region27: #{tclt_forward_pallas.1} parent=0 // pred_check_branch
    %1392 = sbr.rel (0) target = $region29
  $region28: #{tclt_forward_pallas.1} parent=0 // pred_region
    _
  $region29: #{tclt_forward_pallas.1} parent=0 // pred_fallthru
    _
  // Predicated region
  $region30: #{tclt_forward_pallas.1} parent=0 // pred_check
    _
  $region31: #{tclt_forward_pallas.1} parent=0 // pred_check_branch
    %1394 = sbr.rel (0) target = $region33
  $region32: #{tclt_forward_pallas.1} parent=0 // pred_region
    _
  $region33: #{tclt_forward_pallas.1} parent=0 // pred_fallthru
    _

</llo_original>
